<compile_context>
chip_gen: v5e
topology: v5e:2x2
jax: 0.10.0
libtpu: 0.0.40
codegen_flags: <defaults>
</compile_context>

<pallas_src>
import jax
import jax.numpy as jnp
from jax.experimental import pallas as pl
from jax.experimental.pallas import tpu as pltpu


def _round_up(x, m):
    return ((x + m - 1) // m) * m


def _largest_aligned_divisor(d, cap, align=128):
    """Largest multiple of `align` that divides d and is <= cap.

    Falls back to d itself (full dim is always a legal block size)."""
    if d % align != 0:
        return d
    best = align
    k = align
    limit = min(d, cap)
    while k <= limit:
        if d % k == 0:
            best = k
        k += align
    return best


# ----------------------------------------------------------------------------
# Kernels
# ----------------------------------------------------------------------------
def _residual_kernel_1pass(x_ref, xres_ref, w_ref, b_ref, o_ref):
    """out[i,j] = x[i,:] @ w[:,j] + b[j] + x[i,j]   (full K in one shot)."""
    y = jnp.dot(x_ref[...], w_ref[...], preferred_element_type=jnp.float32)
    y = y + b_ref[...].astype(jnp.float32)
    y = y + xres_ref[...].astype(jnp.float32)
    o_ref[...] = y.astype(o_ref.dtype)


def _residual_kernel_kloop_f32out(x_ref, xres_ref, w_ref, b_ref, o_ref):
    """K-tiled variant accumulating directly into the (f32) output tile."""
    k = pl.program_id(2)

    @pl.when(k == 0)
    def _():
        o_ref[...] = jnp.zeros_like(o_ref)

    o_ref[...] += jnp.dot(x_ref[...], w_ref[...],
                          preferred_element_type=jnp.float32)

    @pl.when(k == pl.num_programs(2) - 1)
    def _():
        o_ref[...] = (o_ref[...] + b_ref[...].astype(jnp.float32)
                      + xres_ref[...].astype(jnp.float32))


def _residual_kernel_kloop_acc(x_ref, xres_ref, w_ref, b_ref, o_ref, acc_ref):
    """K-tiled variant with an f32 VMEM accumulator (non-f32 outputs)."""
    k = pl.program_id(2)

    @pl.when(k == 0)
    def _():
        acc_ref[...] = jnp.zeros_like(acc_ref)

    acc_ref[...] += jnp.dot(x_ref[...], w_ref[...],
                            preferred_element_type=jnp.float32)

    @pl.when(k == pl.num_programs(2) - 1)
    def _():
        y = (acc_ref[...] + b_ref[...].astype(jnp.float32)
             + xres_ref[...].astype(jnp.float32))
        o_ref[...] = y.astype(o_ref.dtype)


# ----------------------------------------------------------------------------
# Wrapper
# ----------------------------------------------------------------------------
def residual_linear(x, w, b, *, tm=512, tn=512, tk=None, use_bf16=True):
    """x: (M, D), w: (D, D), b: (1, D).  Returns x @ w + b + x."""
    M, D = x.shape
    assert w.shape == (D, D), w.shape
    assert b.shape == (1, D), b.shape

    out_dtype = x.dtype
    mm_dtype = jnp.bfloat16 if use_bf16 else x.dtype

    # Wrapper-side casts: the matmul streams travel HBM->VMEM as bf16.
    x_mm = x.astype(mm_dtype)
    w_mm = w.astype(mm_dtype)
    b_f32 = b.astype(jnp.float32)

    mm_it = jnp.dtype(mm_dtype).itemsize
    res_it = jnp.dtype(x.dtype).itemsize
    out_it = jnp.dtype(out_dtype).itemsize

    # --- N tiling: lane-dense divisor of D (or full D for ragged dims) ------
    tn = _largest_aligned_divisor(D, tn)

    # --- M tiling ------------------------------------------------------------
    tm = min(tm, max(8, _round_up(M, 8)))
    tm = _round_up(tm, 8)
    M_pad = _round_up(M, tm)
    # v7x has 2 TensorCores: if the grid would be (1, 1), split M so both get
    # work (only worth it once M is non-trivial; harmless on 1-TC chips).
    if (M_pad // tm) == 1 and (D // tn) == 1 and M_pad >= 64:
        tm = _round_up((M_pad + 1) // 2, 32)
        M_pad = _round_up(M, tm)

    # --- K tiling / single-pass decision --------------------------------------
    def _vmem_est(k_tile, with_acc):
        est = 2 * (tm * k_tile * mm_it      # x matmul tile (double-buffered)
                   + tm * tn * res_it       # residual tile
                   + k_tile * tn * mm_it    # weight tile
                   + tn * 4                 # bias tile
                   + tm * tn * out_it)      # output tile
        if with_acc:
            est += tm * tn * 4
        return est

    VMEM_BUDGET = 24 * 1024 * 1024
    single_pass = (tk is None or tk >= D) and _vmem_est(D, False) <= VMEM_BUDGET
    if single_pass:
        tk = D
    else:
        tk = _largest_aligned_divisor(D, tk if tk is not None else 512)

    # Pad ragged token counts; padded rows are zeros and are sliced off below.
    if M_pad != M:
        x_mm_in = jnp.pad(x_mm, ((0, M_pad - M), (0, 0)))
        x_res_in = jnp.pad(x, ((0, M_pad - M), (0, 0)))
    else:
        x_mm_in, x_res_in = x_mm, x

    acc_in_out = (out_dtype == jnp.float32)
    vmem_est = _vmem_est(tk, (not single_pass) and (not acc_in_out))
    vmem_limit = int(min(48 * 1024 * 1024, max(4 * 1024 * 1024, 2 * vmem_est)))

    cost = pl.CostEstimate(
        flops=2 * M_pad * D * D,
        bytes_accessed=(M_pad * D * mm_it      # x (matmul)
                        + M_pad * D * res_it   # x (residual)
                        + D * D * mm_it        # weight
                        + D * 4                # bias
                        + M_pad * D * out_it), # output
        transcendentals=0,
    )

    if single_pass:
        grid = (M_pad // tm, D // tn)
        out = pl.pallas_call(
            _residual_kernel_1pass,
            out_shape=jax.ShapeDtypeStruct((M_pad, D), out_dtype),
            grid_spec=pltpu.PrefetchScalarGridSpec(
                num_scalar_prefetch=0,
                grid=grid,
                in_specs=[
                    pl.BlockSpec((tm, D), lambda i, j: (i, 0)),    # x (matmul lhs)
                    pl.BlockSpec((tm, tn), lambda i, j: (i, j)),   # x (residual)
                    pl.BlockSpec((D, tn), lambda i, j: (0, j)),    # weight panel
                    pl.BlockSpec((1, tn), lambda i, j: (0, j)),    # bias
                ],
                out_specs=pl.BlockSpec((tm, tn), lambda i, j: (i, j)),
            ),
            compiler_params=pltpu.CompilerParams(
                dimension_semantics=("parallel", "parallel"),
                vmem_limit_bytes=vmem_limit,
            ),
            cost_estimate=cost,
        )(x_mm_in, x_res_in, w_mm, b_f32)
    else:
        grid = (M_pad // tm, D // tn, D // tk)
        kernel = (_residual_kernel_kloop_f32out if acc_in_out
                  else _residual_kernel_kloop_acc)
        scratch = [] if acc_in_out else [pltpu.VMEM((tm, tn), jnp.float32)]
        out = pl.pallas_call(
            kernel,
            out_shape=jax.ShapeDtypeStruct((M_pad, D), out_dtype),
            grid_spec=pltpu.PrefetchScalarGridSpec(
                num_scalar_prefetch=0,
                grid=grid,
                in_specs=[
                    pl.BlockSpec((tm, tk), lambda i, j, k: (i, k)),  # x (matmul)
                    pl.BlockSpec((tm, tn), lambda i, j, k: (i, j)),  # x (residual)
                    pl.BlockSpec((tk, tn), lambda i, j, k: (k, j)),  # weight tile
                    pl.BlockSpec((1, tn), lambda i, j, k: (0, j)),   # bias tile
                ],
                out_specs=pl.BlockSpec((tm, tn), lambda i, j, k: (i, j)),
                scratch_shapes=scratch,
            ),
            compiler_params=pltpu.CompilerParams(
                dimension_semantics=("parallel", "parallel", "arbitrary"),
                vmem_limit_bytes=vmem_limit,
            ),
            cost_estimate=cost,
        )(x_mm_in, x_res_in, w_mm, b_f32)

    return out[:M] if M_pad != M else out


if __name__ == "__main__":
    # Small shapes consistent with a transformer block: batch=2, seq=8, dim=128
    batch, seq, dim = 2, 8, 128
    key = jax.random.PRNGKey(0)
    kx, kw, kb = jax.random.split(key, 3)

    x = jax.random.normal(kx, (batch, seq, dim), dtype=jnp.float32)
    # Deterministic parameter init (synthetic, not a checkpoint load).
    w = jax.random.normal(kw, (dim, dim), dtype=jnp.float32) * (1.0 / dim ** 0.5)
    b = jax.random.normal(kb, (1, dim), dtype=jnp.float32) * 0.01

    x2d = x.reshape(batch * seq, dim)          # glue reshape in plain JAX
    out = residual_linear(x2d, w, b)
    out = out.reshape(batch, seq, dim)
    jax.block_until_ready(out)

    # Reference check: Residual(Linear)(x) == x @ W + b + x
    # (bf16 MXU matmul with f32 accumulation -> slightly looser tolerance)
    ref = x @ w + b + x
    assert jnp.allclose(out, ref, atol=5e-2, rtol=5e-2), "mismatch vs reference"

    print("KERNEL_OK")
</pallas_src>

<mosaic_0001>
module attributes {stable_mosaic.version = 11 : i64} {
  func.func @_residual_kernel_1pass(%arg0: i32, %arg1: i32, %arg2: memref<16x128xbf16, #tpu.memory_space<vmem>>, %arg3: memref<16x128xf32, #tpu.memory_space<vmem>>, %arg4: memref<128x128xbf16, #tpu.memory_space<vmem>>, %arg5: memref<1x128xf32, #tpu.memory_space<vmem>>, %arg6: memref<16x128xf32, #tpu.memory_space<vmem>>) attributes {dimension_semantics = [#tpu.dimension_semantics<parallel>, #tpu.dimension_semantics<parallel>], iteration_bounds = array<i64: 1, 1>, scalar_prefetch = 0 : i64, scratch_operands = 0 : i64, tpu.core_type = #tpu.core_type<tc>, window_params = [{transform_indices = @transform_0, window_bounds = array<i64: 16, 128>}, {transform_indices = @transform_1, window_bounds = array<i64: 16, 128>}, {transform_indices = @transform_2, window_bounds = array<i64: 128, 128>}, {transform_indices = @transform_3, window_bounds = array<i64: 1, 128>}, {transform_indices = @transform_4, window_bounds = array<i64: 16, 128>}]} {
    %c0 = arith.constant 0 : index
    %c0_0 = arith.constant 0 : index
    %0 = vector.load %arg2[%c0, %c0_0] : memref<16x128xbf16, #tpu.memory_space<vmem>>, vector<16x128xbf16>
    %c0_1 = arith.constant 0 : index
    %c0_2 = arith.constant 0 : index
    %1 = vector.load %arg4[%c0_1, %c0_2] : memref<128x128xbf16, #tpu.memory_space<vmem>>, vector<128x128xbf16>
    %cst = arith.constant dense<0.000000e+00> : vector<16x128xf32>
    %2 = tpu.matmul %0, %1, %cst {dimension_numbers = #tpu.dot_dimension_numbers<[1], [0], [0], [1], [0, 0, 1, 1], [], []>} : vector<16x128xbf16>, vector<128x128xbf16>, vector<16x128xf32> -> vector<16x128xf32>
    %c0_3 = arith.constant 0 : index
    %c0_4 = arith.constant 0 : index
    %3 = vector.load %arg5[%c0_3, %c0_4] : memref<1x128xf32, #tpu.memory_space<vmem>>, vector<1x128xf32>
    %4 = vector.broadcast %3 : vector<1x128xf32> to vector<16x128xf32>
    %5 = arith.addf %2, %4 : vector<16x128xf32>
    %c0_5 = arith.constant 0 : index
    %c0_6 = arith.constant 0 : index
    %6 = vector.load %arg3[%c0_5, %c0_6] : memref<16x128xf32, #tpu.memory_space<vmem>>, vector<16x128xf32>
    %7 = arith.addf %5, %6 : vector<16x128xf32>
    %c0_7 = arith.constant 0 : index
    %c0_8 = arith.constant 0 : index
    %8 = vector.load %arg6[%c0_7, %c0_8] : memref<16x128xf32, #tpu.memory_space<vmem>>, vector<16x128xf32>
    tpu.vector_store %arg6[%c0_7, %c0_8], %7 {strides = array<i32>} : memref<16x128xf32, #tpu.memory_space<vmem>>, vector<16x128xf32>,
    return
  }
  func.func @transform_0(%arg0: i32, %arg1: i32) -> (i32, i32) {
    %c0_i32 = arith.constant 0 : i32
    %c0_i32_0 = arith.constant 0 : i32
    return %arg0, %c0_i32 : i32, i32
  }
  func.func @transform_1(%arg0: i32, %arg1: i32) -> (i32, i32) {
    %c0_i32 = arith.constant 0 : i32
    return %arg0, %arg1 : i32, i32
  }
  func.func @transform_2(%arg0: i32, %arg1: i32) -> (i32, i32) {
    %c0_i32 = arith.constant 0 : i32
    %c0_i32_0 = arith.constant 0 : i32
    return %c0_i32, %arg1 : i32, i32
  }
  func.func @transform_3(%arg0: i32, %arg1: i32) -> (i32, i32) {
    %c0_i32 = arith.constant 0 : i32
    %c0_i32_0 = arith.constant 0 : i32
    return %c0_i32, %arg1 : i32, i32
  }
  func.func @transform_4(%arg0: i32, %arg1: i32) -> (i32, i32) {
    %c0_i32 = arith.constant 0 : i32
    return %arg0, %arg1 : i32, i32
  }
}

</mosaic_0001>

<llo_original>
// kernel: tpu_custom_call.1
$region0: #{tpu_custom_call.1}
  #allocation0 [shape = 'u32[]', space=smem, size = 0x4, offset = 0x4, fixed_abs, tag = 'smem constant byte address 0x4 - core index']
  #allocation1 [shape = 'u32[72,128]{1,0:T(1,128)}', space=vmem, size = 0x9000, scoped, tag = 'internal scratch']
  %s0 = inlined_call_operand.hbm [shape: bf16[16,128], index: 0, kind: input, shape index: {}]
  %s1 = inlined_call_operand.hbm [shape: f32[16,128], index: 1, kind: input, shape index: {}]
  %s2 = inlined_call_operand.hbm [shape: bf16[128,128], index: 2, kind: input, shape index: {}]
  %s3 = inlined_call_operand.vmem [shape: f32[1,128], index: 3, kind: input, shape index: {}]
  %s4 = inlined_call_operand.hbm [shape: f32[16,128], index: 4, kind: output, shape index: {}]
  %s5 = sld [smem:[#allocation0]]
  $region38: #{tpu_custom_call.1} parent=0
    _
  %s7 = ssub.s32 1, %s5
  %s8 = scalar_select 0, %s7, %s5
  $region1: #{tpu_custom_call.1} parent=0
    #allocation2 [shape = 'u8[4096]{0}', space=vmem, size = 0x1000, scoped, tag = 'input window, operand 0, single buffered']
    #allocation3 [shape = 's32[1]{0}', space=sflag, size = 0x4, scoped, tag = 'scoped memory for tpu_custom_call.1']
    #allocation4 [shape = 's32[1]{0}', space=sflag, size = 0x4, scoped, tag = 'scoped memory for tpu_custom_call.1']
    #allocation5 [shape = 'u8[8192]{0}', space=vmem, size = 0x2000, scoped, tag = 'input window, operand 1, single buffered']
    #allocation6 [shape = 's32[1]{0}', space=sflag, size = 0x4, scoped, tag = 'scoped memory for tpu_custom_call.1']
    #allocation7 [shape = 'u8[32768]{0}', space=vmem, size = 0x8000, scoped, tag = 'input window, operand 2, single buffered']
    #allocation8 [shape = 'u8[8192]{0}', space=vmem, size = 0x2000, scoped, tag = 'output window, operand 0, single buffered']
    %9 = vsyncpa [#allocation3], 0
    %10 = vsyncpa [#allocation6], 0
    %11 = vsyncpa [#allocation4], 0
    // Predicated region
    $region2: #{tpu_custom_call.1} parent=1 // pred_check
      _
    $region3: #{tpu_custom_call.1} parent=1 // pred_check_branch
      %13 = sbr.rel (0) target = $region5
    $region4: #{tpu_custom_call.1} parent=1 // pred_region
      %15 = vsyncadd [#allocation3], 0
      %s16 = sshll.u32 %s0, 4
      %s17 = int_to_ptr.hbm [resolvable:$true] %s16
      %s18 = sshll.u32 [#allocation2], 4
      %s19 = int_to_ptr.vmem [resolvable:$true] %s18
      %24 = dma.hbm_to_vmem [thread:$0]  %s17, 128, %s19, [#allocation3], 64, 64, 4
    $region5: #{tpu_custom_call.1} parent=1 // pred_fallthru
      _
    // Predicated region
    $region6: #{tpu_custom_call.1} parent=1 // pred_check
      _
    $region7: #{tpu_custom_call.1} parent=1 // pred_check_branch
      %26 = sbr.rel (0) target = $region9
    $region8: #{tpu_custom_call.1} parent=1 // pred_region
      %28 = vsyncadd [#allocation6], 0
      %s29 = sshll.u32 %s1, 4
      %s30 = int_to_ptr.hbm [resolvable:$true] %s29
      %s31 = sshll.u32 [#allocation5], 4
      %s32 = int_to_ptr.vmem [resolvable:$true] %s31
      %37 = dma.hbm_to_vmem [thread:$0]  %s30, 256, %s32, [#allocation6], 128, 128, 8
    $region9: #{tpu_custom_call.1} parent=1 // pred_fallthru
      _
    // Predicated region
    $region10: #{tpu_custom_call.1} parent=1 // pred_check
      _
    $region11: #{tpu_custom_call.1} parent=1 // pred_check_branch
      %39 = sbr.rel (0) target = $region13
    $region12: #{tpu_custom_call.1} parent=1 // pred_region
      %41 = vsyncadd [#allocation6], 0
      %s42 = sshll.u32 %s2, 4
      %s43 = int_to_ptr.hbm [resolvable:$true] %s42
      %s44 = sshll.u32 [#allocation7], 4
      %s45 = int_to_ptr.vmem [resolvable:$true] %s44
      %50 = dma.hbm_to_vmem [thread:$0]  %s43, 1024, %s45, [#allocation6], 64, 64, 4
    $region13: #{tpu_custom_call.1} parent=1 // pred_fallthru
      _
    // Predicated region
    $region14: #{tpu_custom_call.1} parent=1 // pred_check
      _
    $region15: #{tpu_custom_call.1} parent=1 // pred_check_branch
      %52 = sbr.rel (0) target = $region17
    $region16: #{tpu_custom_call.1} parent=1 // pred_region
      _
    $region17: #{tpu_custom_call.1} parent=1 // pred_fallthru
      _
    // Predicated region
    $region18: #{tpu_custom_call.1} parent=1 // pred_check
      _
    $region19: #{tpu_custom_call.1} parent=1 // pred_check_branch
      %54 = sbr.rel (0) target = $region21
    $region20: #{tpu_custom_call.1} parent=1 // pred_region
      %56 = dma.done [#allocation3], 128
    $region21: #{tpu_custom_call.1} parent=1 // pred_fallthru
      _
    // Predicated region
    $region22: #{tpu_custom_call.1} parent=1 // pred_check
      _
    $region23: #{tpu_custom_call.1} parent=1 // pred_check_branch
      %58 = sbr.rel (0) target = $region25
    $region24: #{tpu_custom_call.1} parent=1 // pred_region
      %60 = dma.done [#allocation6], 256
    $region25: #{tpu_custom_call.1} parent=1 // pred_fallthru
      _
    // Predicated region
    $region26: #{tpu_custom_call.1} parent=1 // pred_check
      _
    $region27: #{tpu_custom_call.1} parent=1 // pred_check_branch
      %62 = sbr.rel (0) target = $region29
    $region28: #{tpu_custom_call.1} parent=1 // pred_region
      %64 = dma.done [#allocation6], 1024
    $region29: #{tpu_custom_call.1} parent=1 // pred_fallthru
      _
    %v65 = vld [vmem:[#allocation2] sm:$0xf]
    %v66 = vld [vmem:[#allocation2 + $0x4] sm:$0xf]
    %v67 = vld [vmem:[#allocation7] sm:$0xf]
    %v68 = vld [vmem:[#allocation7 + $0x4] sm:$0xf]
    %v69 = vld [vmem:[#allocation7 + $0x8] sm:$0xf]
    %v70 = vld [vmem:[#allocation7 + $0xc] sm:$0xf]
    %v71 = vld [vmem:[#allocation7 + $0x10] sm:$0xf]
    %v72 = vld [vmem:[#allocation7 + $0x14] sm:$0xf]
    %v73 = vld [vmem:[#allocation7 + $0x18] sm:$0xf]
    %v74 = vld [vmem:[#allocation7 + $0x1c] sm:$0xf]
    %v75 = vld [vmem:[#allocation7 + $0x20] sm:$0xf]
    %v76 = vld [vmem:[#allocation7 + $0x24] sm:$0xf]
    %v77 = vld [vmem:[#allocation7 + $0x28] sm:$0xf]
    %v78 = vld [vmem:[#allocation7 + $0x2c] sm:$0xf]
    %v79 = vld [vmem:[#allocation7 + $0x30] sm:$0xf]
    %v80 = vld [vmem:[#allocation7 + $0x34] sm:$0xf]
    %v81 = vld [vmem:[#allocation7 + $0x38] sm:$0xf]
    %v82 = vld [vmem:[#allocation7 + $0x3c] sm:$0xf]
    %v83 = vld [vmem:[%s3] sm:$0x1]
    %v85 = vperm.slane %v83, 0
    %v89 = vunpack.c.l.b16 %v65
    %v90 = vunpack.c.l.b16 %v66
    %v91 = vpack.c.b16 %v90, %v89
    %v109 = vunpack.c.l.b16 %v67
    %v110 = vunpack.c.l.b16 %v68
    %v111 = vunpack.c.l.b16 %v69
    %v112 = vunpack.c.l.b16 %v70
    %v113 = vunpack.c.l.b16 %v71
    %v114 = vunpack.c.l.b16 %v72
    %v115 = vunpack.c.l.b16 %v73
    %v116 = vunpack.c.l.b16 %v74
    %v117 = vunpack.c.l.b16 %v75
    %v118 = vunpack.c.l.b16 %v76
    %v119 = vunpack.c.l.b16 %v77
    %v120 = vunpack.c.l.b16 %v78
    %v121 = vunpack.c.l.b16 %v79
    %v122 = vunpack.c.l.b16 %v80
    %v123 = vunpack.c.l.b16 %v81
    %v124 = vunpack.c.l.b16 %v82
    %v125 = vpack.c.b16 %v110, %v109
    %v126 = vpack.c.b16 %v112, %v111
    %v127 = vpack.c.b16 %v114, %v113
    %v128 = vpack.c.b16 %v116, %v115
    %v129 = vpack.c.b16 %v118, %v117
    %v130 = vpack.c.b16 %v120, %v119
    %v131 = vpack.c.b16 %v122, %v121
    %v132 = vpack.c.b16 %v124, %v123
    %141 = vmatpush.bf16.msra.mxu0 %v132
    %142 = vmatpush.bf16.msra.mxu0 %v131
    %143 = vmatpush.bf16.msra.mxu0 %v130
    %144 = vmatpush.bf16.msra.mxu0 %v129
    %145 = vmatpush.bf16.msra.mxu0 %v128
    %146 = vmatpush.bf16.msra.mxu0 %v127
    %147 = vmatpush.bf16.msra.mxu0 %v126
    %148 = vmatpush.bf16.msra.mxu0 %v125
    %149 = vmatmul.bf16.gmra.mxu0 %v91
    %v150 = vpop.f32.mrf.mxu0
    %v151 = vadd.f32 %v85, %v150
    %v152 = vpop.f32.mrf.mxu0
    %v153 = vadd.f32 %v85, %v152
    %154 = vdwg.mxu0
    %v155 = vld [vmem:[#allocation5] sm:$0xff]
    %v156 = vld [vmem:[#allocation5 + $0x8] sm:$0xff]
    %v157 = vadd.f32 %v151, %v155
    %v158 = vadd.f32 %v153, %v156
    %159 = vst [vmem:[#allocation8] sm:$0xff] %v157
    %160 = vst [vmem:[#allocation8 + $0x8] sm:$0xff] %v158
    // Predicated region
    $region30: #{tpu_custom_call.1} parent=1 // pred_check
      _
    $region31: #{tpu_custom_call.1} parent=1 // pred_check_branch
      %162 = sbr.rel (0) target = $region33
    $region32: #{tpu_custom_call.1} parent=1 // pred_region
      %164 = vsyncadd [#allocation4], 0
      %s165 = sshll.u32 [#allocation8], 4
      %s166 = int_to_ptr.vmem [resolvable:$true] %s165
      %s167 = sshll.u32 %s4, 4
      %s168 = int_to_ptr.hbm [resolvable:$true] %s167
      %173 = dma.vmem_to_hbm [thread:$0]  %s166, 256, %s168, [#allocation4], 128, 128, 8
    $region33: #{tpu_custom_call.1} parent=1 // pred_fallthru
      _
    // Predicated region
    $region34: #{tpu_custom_call.1} parent=1 // pred_check
      _
    $region35: #{tpu_custom_call.1} parent=1 // pred_check_branch
      %175 = sbr.rel (0) target = $region37
    $region36: #{tpu_custom_call.1} parent=1 // pred_region
      %177 = dma.done [#allocation4], 256
    $region37: #{tpu_custom_call.1} parent=1 // pred_fallthru
      _
    %178 = vsyncpa [#allocation3], 1
    %179 = vsyncpa [#allocation6], 1
    %180 = vsyncpa [#allocation4], 1

</llo_original>
